<compile_context>
chip_gen: v7x
topology: tpu7x:2x2x1
jax: 0.10.0
libtpu: 0.0.40
codegen_flags: <defaults>
</compile_context>

<pallas_src>
import jax
import jax.numpy as jnp
from jax.experimental import pallas as pl
from jax.experimental.pallas import tpu as pltpu


_MXU_MIN_C = 16  # channel mix routes to the MXU at/above this channel count


# ----------------------------------------------------------------------------
# Kernels
# ----------------------------------------------------------------------------
def _make_mxu_kernel():
    """o = W @ x + b + x on a (C, TN) tile, channel mix on the MXU."""

    def kernel(x_ref, w_ref, b_ref, o_ref):
        # x_ref: (C, TN) VMEM   w_ref: (C, C) VMEM   b_ref: (C, 1) VMEM f32
        x = x_ref[...]
        # Native-dtype operands (bf16 stays bf16 -> full-rate MXU, half the
        # HBM/VMEM bytes); accumulate in f32.
        y = jnp.dot(w_ref[...], x, preferred_element_type=jnp.float32)
        y = y + b_ref[...] + x.astype(jnp.float32)
        o_ref[...] = y.astype(o_ref.dtype)

    return kernel


def _make_vpu_kernel(C: int):
    """Tiny-C path: unrolled scalar-broadcast FMAs, W and b live in SMEM."""

    def kernel(x_ref, w_ref, b_ref, o_ref):
        # x_ref: (C, TN) VMEM   w_ref: (C, C) SMEM f32   b_ref: (C,) SMEM f32
        x = x_ref[...].astype(jnp.float32)
        for o in range(C):
            acc = x[o : o + 1, :] + b_ref[o]          # residual row + bias
            for i in range(C):
                acc = acc + w_ref[o, i] * x[i : i + 1, :]   # scalar broadcast
            o_ref[o : o + 1, :] = acc.astype(o_ref.dtype)

    return kernel


# ----------------------------------------------------------------------------
# Tiling / VMEM planning
# ----------------------------------------------------------------------------
def _vmem_budgets():
    """(plan_budget_bytes, vmem_limit_bytes) per TPU generation."""
    kind = ""
    try:
        kind = jax.devices()[0].device_kind.lower()
    except Exception:
        pass
    if ("v5" in kind) or ("v6" in kind):
        # 128 MiB physical VMEM: plan big, raise the scoped limit explicitly.
        return 72 * 1024 * 1024, 96 * 1024 * 1024
    # v7x (64 MiB per TensorCore) and unknown chips: stay conservative.
    return 36 * 1024 * 1024, 48 * 1024 * 1024


def _round_down_128(n: int) -> int:
    return max(128, (n // 128) * 128)


def _round_up_128(n: int) -> int:
    return ((n + 127) // 128) * 128


def _pick_spatial_tile(S, C, itemsize, batch, plan_budget, use_mxu):
    """Largest lane-aligned spatial tile whose double-buffered plan fits."""
    resident = 2 * C * C * itemsize + 2 * C * 4     # double-buffered W + bias
    per_lane = 4 * C * itemsize                     # (in + out) x double buffer
    tn_budget = max((plan_budget - resident) // per_lane, 128)
    tn = min(S, tn_budget)
    if use_mxu:
        # Amortize MXU weight push/drain: keep the N dim long when possible.
        tn = max(tn, min(S, 512))
    if tn < S:
        tn = _round_down_128(tn)                    # ragged tail masked by Pallas
    # Megacore: guarantee >= 2 parallel grid steps even when B == 1.
    if batch < 2 and S > 128 and tn >= S:
        tn = _round_up_128((S + 1) // 2)
    return tn


# ----------------------------------------------------------------------------
# Wrapper
# ----------------------------------------------------------------------------
def residual_forward(x_nchw, w_oi, b, *, donate_x: bool = False):
    """fn(x) + x with fn = 1x1 Conv2d(C, C); NCHW in / NCHW out.

    x_nchw : (B, C, H, W)
    w_oi   : (C_out, C_in)  (1x1 conv weight, squeezed)
    b      : (C_out,)
    """
    B, C, H, W = x_nchw.shape
    S = H * W

    x3d = x_nchw.reshape(B, C, S)                   # contiguous reshape only
    itemsize = jnp.dtype(x3d.dtype).itemsize
    use_mxu = C >= _MXU_MIN_C

    plan_budget, vmem_limit = _vmem_budgets()
    TN = _pick_spatial_tile(S, C, itemsize, B, plan_budget, use_mxu)
    grid = (B, pl.cdiv(S, TN))

    x_spec = pl.BlockSpec((None, C, TN), lambda bb, ss: (bb, 0, ss))
    o_spec = pl.BlockSpec((None, C, TN), lambda bb, ss: (bb, 0, ss))

    if use_mxu:
        kernel = _make_mxu_kernel()
        w_in = w_oi.astype(x3d.dtype)               # bf16 weights feed MXU natively
        b_in = b.astype(jnp.float32).reshape(C, 1)
        w_spec = pl.BlockSpec((C, C), lambda bb, ss: (0, 0))
        b_spec = pl.BlockSpec((C, 1), lambda bb, ss: (0, 0))
    else:
        kernel = _make_vpu_kernel(C)
        w_in = w_oi.astype(jnp.float32)             # scalars read from SMEM
        b_in = b.astype(jnp.float32)
        w_spec = pl.BlockSpec(memory_space=pltpu.MemorySpace.SMEM)
        b_spec = pl.BlockSpec(memory_space=pltpu.MemorySpace.SMEM)

    out3d = pl.pallas_call(
        kernel,
        out_shape=jax.ShapeDtypeStruct((B, C, S), x3d.dtype),
        grid=grid,
        in_specs=[x_spec, w_spec, b_spec],
        out_specs=o_spec,
        input_output_aliases=({0: 0} if donate_x else {}),
        compiler_params=pltpu.CompilerParams(
            dimension_semantics=("parallel", "parallel"),
            vmem_limit_bytes=vmem_limit,
        ),
    )(x3d, w_in, b_in)

    return out3d.reshape(B, C, H, W)


# ----------------------------------------------------------------------------
# Demo / self-check
# ----------------------------------------------------------------------------
if __name__ == "__main__":
    key = jax.random.PRNGKey(0)
    kx, kw, kb = jax.random.split(key, 3)

    fwd = jax.jit(residual_forward)

    # Small VQ-VAE-like shape: tiny C -> VPU/SMEM path.
    B, C, H, W = 2, 4, 16, 16
    x = jax.random.normal(kx, (B, C, H, W), dtype=jnp.float32)
    w = jax.random.normal(kw, (C, C), dtype=jnp.float32) * 0.1
    b = jax.random.normal(kb, (C,), dtype=jnp.float32) * 0.1

    out = jax.block_until_ready(fwd(x, w, b))
    ref = jnp.einsum("oc,bchw->bohw", w, x) + b.reshape(1, C, 1, 1) + x
    assert out.shape == (B, C, H, W)
    assert jnp.allclose(out, ref, atol=1e-5, rtol=1e-5)

    # Also exercise the MXU path (C >= 16) and the B == 1 forced grid split.
    B2, C2, H2, W2 = 1, 32, 16, 16
    x2 = jax.random.normal(kx, (B2, C2, H2, W2), dtype=jnp.float32)
    w2 = jax.random.normal(kw, (C2, C2), dtype=jnp.float32) * 0.1
    b2 = jax.random.normal(kb, (C2,), dtype=jnp.float32) * 0.1

    out2 = jax.block_until_ready(fwd(x2, w2, b2))
    ref2 = jnp.einsum("oc,bchw->bohw", w2, x2) + b2.reshape(1, C2, 1, 1) + x2
    assert out2.shape == (B2, C2, H2, W2)
    # Loose tolerance: MXU f32 matmul uses the backend default precision.
    assert jnp.allclose(out2, ref2, atol=2e-2, rtol=2e-2)

    print("KERNEL_OK")
</pallas_src>

<mosaic_0001>
module attributes {stable_mosaic.version = 11 : i64} {
  func.func @kernel(%arg0: i32, %arg1: i32, %arg2: memref<1x4x256xf32, #tpu.memory_space<vmem>>, %arg3: memref<4x4xf32, #tpu.memory_space<smem>>, %arg4: memref<4xf32, #tpu.memory_space<smem>>, %arg5: memref<1x4x256xf32, #tpu.memory_space<vmem>>) attributes {dimension_semantics = [#tpu.dimension_semantics<parallel>, #tpu.dimension_semantics<parallel>], iteration_bounds = array<i64: 2, 1>, scalar_prefetch = 0 : i64, scratch_operands = 0 : i64, tpu.core_type = #tpu.core_type<tc>, window_params = [{transform_indices = @transform_0, window_bounds = array<i64: 1, 4, 256>}, {transform_indices = @transform_1, window_bounds = array<i64: 4, 4>}, {transform_indices = @transform_2, window_bounds = array<i64: 4>}, {transform_indices = @transform_3, window_bounds = array<i64: 1, 4, 256>}]} {
    %c0 = arith.constant 0 : index
    %c0_0 = arith.constant 0 : index
    %c0_1 = arith.constant 0 : index
    %0 = vector.load %arg2[%c0, %c0_0, %c0_1] : memref<1x4x256xf32, #tpu.memory_space<vmem>>, vector<1x4x256xf32>
    %1 = vector.shape_cast %0 : vector<1x4x256xf32> to vector<4x256xf32>
    %2 = vector.extract_strided_slice %1 {offsets = [0, 0], sizes = [1, 256], strides = [1, 1]} : vector<4x256xf32> to vector<1x256xf32>
    %c0_2 = arith.constant 0 : index
    %3 = memref.load %arg4[%c0_2] : memref<4xf32, #tpu.memory_space<smem>>
    %4 = vector.broadcast %3 : f32 to vector<1x256xf32>
    %5 = arith.addf %2, %4 : vector<1x256xf32>
    %c0_3 = arith.constant 0 : index
    %c0_4 = arith.constant 0 : index
    %6 = memref.load %arg3[%c0_3, %c0_4] : memref<4x4xf32, #tpu.memory_space<smem>>
    %7 = vector.extract_strided_slice %1 {offsets = [0, 0], sizes = [1, 256], strides = [1, 1]} : vector<4x256xf32> to vector<1x256xf32>
    %8 = vector.broadcast %6 : f32 to vector<1x256xf32>
    %9 = arith.mulf %8, %7 : vector<1x256xf32>
    %10 = arith.addf %5, %9 : vector<1x256xf32>
    %c0_5 = arith.constant 0 : index
    %c1 = arith.constant 1 : index
    %11 = memref.load %arg3[%c0_5, %c1] : memref<4x4xf32, #tpu.memory_space<smem>>
    %12 = vector.extract_strided_slice %1 {offsets = [1, 0], sizes = [1, 256], strides = [1, 1]} : vector<4x256xf32> to vector<1x256xf32>
    %13 = vector.broadcast %11 : f32 to vector<1x256xf32>
    %14 = arith.mulf %13, %12 : vector<1x256xf32>
    %15 = arith.addf %10, %14 : vector<1x256xf32>
    %c0_6 = arith.constant 0 : index
    %c2 = arith.constant 2 : index
    %16 = memref.load %arg3[%c0_6, %c2] : memref<4x4xf32, #tpu.memory_space<smem>>
    %17 = vector.extract_strided_slice %1 {offsets = [2, 0], sizes = [1, 256], strides = [1, 1]} : vector<4x256xf32> to vector<1x256xf32>
    %18 = vector.broadcast %16 : f32 to vector<1x256xf32>
    %19 = arith.mulf %18, %17 : vector<1x256xf32>
    %20 = arith.addf %15, %19 : vector<1x256xf32>
    %c0_7 = arith.constant 0 : index
    %c3 = arith.constant 3 : index
    %21 = memref.load %arg3[%c0_7, %c3] : memref<4x4xf32, #tpu.memory_space<smem>>
    %22 = vector.extract_strided_slice %1 {offsets = [3, 0], sizes = [1, 256], strides = [1, 1]} : vector<4x256xf32> to vector<1x256xf32>
    %23 = vector.broadcast %21 : f32 to vector<1x256xf32>
    %24 = arith.mulf %23, %22 : vector<1x256xf32>
    %25 = arith.addf %20, %24 : vector<1x256xf32>
    %c0_8 = arith.constant 0 : index
    %c0_9 = arith.constant 0 : index
    %c0_10 = arith.constant 0 : index
    %26 = vector.load %arg5[%c0_8, %c0_9, %c0_10] : memref<1x4x256xf32, #tpu.memory_space<vmem>>, vector<1x1x256xf32>
    %27 = vector.shape_cast %26 : vector<1x1x256xf32> to vector<1x256xf32>
    %28 = vector.shape_cast %25 : vector<1x256xf32> to vector<1x1x256xf32>
    tpu.vector_store %arg5[%c0_8, %c0_9, %c0_10], %28 {strides = array<i32>} : memref<1x4x256xf32, #tpu.memory_space<vmem>>, vector<1x1x256xf32>,
    %29 = vector.extract_strided_slice %1 {offsets = [1, 0], sizes = [1, 256], strides = [1, 1]} : vector<4x256xf32> to vector<1x256xf32>
    %c1_11 = arith.constant 1 : index
    %30 = memref.load %arg4[%c1_11] : memref<4xf32, #tpu.memory_space<smem>>
    %31 = vector.broadcast %30 : f32 to vector<1x256xf32>
    %32 = arith.addf %29, %31 : vector<1x256xf32>
    %c1_12 = arith.constant 1 : index
    %c0_13 = arith.constant 0 : index
    %33 = memref.load %arg3[%c1_12, %c0_13] : memref<4x4xf32, #tpu.memory_space<smem>>
    %34 = vector.extract_strided_slice %1 {offsets = [0, 0], sizes = [1, 256], strides = [1, 1]} : vector<4x256xf32> to vector<1x256xf32>
    %35 = vector.broadcast %33 : f32 to vector<1x256xf32>
    %36 = arith.mulf %35, %34 : vector<1x256xf32>
    %37 = arith.addf %32, %36 : vector<1x256xf32>
    %c1_14 = arith.constant 1 : index
    %c1_15 = arith.constant 1 : index
    %38 = memref.load %arg3[%c1_14, %c1_15] : memref<4x4xf32, #tpu.memory_space<smem>>
    %39 = vector.extract_strided_slice %1 {offsets = [1, 0], sizes = [1, 256], strides = [1, 1]} : vector<4x256xf32> to vector<1x256xf32>
    %40 = vector.broadcast %38 : f32 to vector<1x256xf32>
    %41 = arith.mulf %40, %39 : vector<1x256xf32>
    %42 = arith.addf %37, %41 : vector<1x256xf32>
    %c1_16 = arith.constant 1 : index
    %c2_17 = arith.constant 2 : index
    %43 = memref.load %arg3[%c1_16, %c2_17] : memref<4x4xf32, #tpu.memory_space<smem>>
    %44 = vector.extract_strided_slice %1 {offsets = [2, 0], sizes = [1, 256], strides = [1, 1]} : vector<4x256xf32> to vector<1x256xf32>
    %45 = vector.broadcast %43 : f32 to vector<1x256xf32>
    %46 = arith.mulf %45, %44 : vector<1x256xf32>
    %47 = arith.addf %42, %46 : vector<1x256xf32>
    %c1_18 = arith.constant 1 : index
    %c3_19 = arith.constant 3 : index
    %48 = memref.load %arg3[%c1_18, %c3_19] : memref<4x4xf32, #tpu.memory_space<smem>>
    %49 = vector.extract_strided_slice %1 {offsets = [3, 0], sizes = [1, 256], strides = [1, 1]} : vector<4x256xf32> to vector<1x256xf32>
    %50 = vector.broadcast %48 : f32 to vector<1x256xf32>
    %51 = arith.mulf %50, %49 : vector<1x256xf32>
    %52 = arith.addf %47, %51 : vector<1x256xf32>
    %c0_20 = arith.constant 0 : index
    %c1_21 = arith.constant 1 : index
    %c0_22 = arith.constant 0 : index
    %53 = vector.load %arg5[%c0_20, %c1_21, %c0_22] : memref<1x4x256xf32, #tpu.memory_space<vmem>>, vector<1x1x256xf32>
    %54 = vector.shape_cast %53 : vector<1x1x256xf32> to vector<1x256xf32>
    %55 = vector.shape_cast %52 : vector<1x256xf32> to vector<1x1x256xf32>
    tpu.vector_store %arg5[%c0_20, %c1_21, %c0_22], %55 {strides = array<i32>} : memref<1x4x256xf32, #tpu.memory_space<vmem>>, vector<1x1x256xf32>,
    %56 = vector.extract_strided_slice %1 {offsets = [2, 0], sizes = [1, 256], strides = [1, 1]} : vector<4x256xf32> to vector<1x256xf32>
    %c2_23 = arith.constant 2 : index
    %57 = memref.load %arg4[%c2_23] : memref<4xf32, #tpu.memory_space<smem>>
    %58 = vector.broadcast %57 : f32 to vector<1x256xf32>
    %59 = arith.addf %56, %58 : vector<1x256xf32>
    %c2_24 = arith.constant 2 : index
    %c0_25 = arith.constant 0 : index
    %60 = memref.load %arg3[%c2_24, %c0_25] : memref<4x4xf32, #tpu.memory_space<smem>>
    %61 = vector.extract_strided_slice %1 {offsets = [0, 0], sizes = [1, 256], strides = [1, 1]} : vector<4x256xf32> to vector<1x256xf32>
    %62 = vector.broadcast %60 : f32 to vector<1x256xf32>
    %63 = arith.mulf %62, %61 : vector<1x256xf32>
    %64 = arith.addf %59, %63 : vector<1x256xf32>
    %c2_26 = arith.constant 2 : index
    %c1_27 = arith.constant 1 : index
    %65 = memref.load %arg3[%c2_26, %c1_27] : memref<4x4xf32, #tpu.memory_space<smem>>
    %66 = vector.extract_strided_slice %1 {offsets = [1, 0], sizes = [1, 256], strides = [1, 1]} : vector<4x256xf32> to vector<1x256xf32>
    %67 = vector.broadcast %65 : f32 to vector<1x256xf32>
    %68 = arith.mulf %67, %66 : vector<1x256xf32>
    %69 = arith.addf %64, %68 : vector<1x256xf32>
    %c2_28 = arith.constant 2 : index
    %c2_29 = arith.constant 2 : index
    %70 = memref.load %arg3[%c2_28, %c2_29] : memref<4x4xf32, #tpu.memory_space<smem>>
    %71 = vector.extract_strided_slice %1 {offsets = [2, 0], sizes = [1, 256], strides = [1, 1]} : vector<4x256xf32> to vector<1x256xf32>
    %72 = vector.broadcast %70 : f32 to vector<1x256xf32>
    %73 = arith.mulf %72, %71 : vector<1x256xf32>
    %74 = arith.addf %69, %73 : vector<1x256xf32>
    %c2_30 = arith.constant 2 : index
    %c3_31 = arith.constant 3 : index
    %75 = memref.load %arg3[%c2_30, %c3_31] : memref<4x4xf32, #tpu.memory_space<smem>>
    %76 = vector.extract_strided_slice %1 {offsets = [3, 0], sizes = [1, 256], strides = [1, 1]} : vector<4x256xf32> to vector<1x256xf32>
    %77 = vector.broadcast %75 : f32 to vector<1x256xf32>
    %78 = arith.mulf %77, %76 : vector<1x256xf32>
    %79 = arith.addf %74, %78 : vector<1x256xf32>
    %c0_32 = arith.constant 0 : index
    %c2_33 = arith.constant 2 : index
    %c0_34 = arith.constant 0 : index
    %80 = vector.load %arg5[%c0_32, %c2_33, %c0_34] : memref<1x4x256xf32, #tpu.memory_space<vmem>>, vector<1x1x256xf32>
    %81 = vector.shape_cast %80 : vector<1x1x256xf32> to vector<1x256xf32>
    %82 = vector.shape_cast %79 : vector<1x256xf32> to vector<1x1x256xf32>
    tpu.vector_store %arg5[%c0_32, %c2_33, %c0_34], %82 {strides = array<i32>} : memref<1x4x256xf32, #tpu.memory_space<vmem>>, vector<1x1x256xf32>,
    %83 = vector.extract_strided_slice %1 {offsets = [3, 0], sizes = [1, 256], strides = [1, 1]} : vector<4x256xf32> to vector<1x256xf32>
    %c3_35 = arith.constant 3 : index
    %84 = memref.load %arg4[%c3_35] : memref<4xf32, #tpu.memory_space<smem>>
    %85 = vector.broadcast %84 : f32 to vector<1x256xf32>
    %86 = arith.addf %83, %85 : vector<1x256xf32>
    %c3_36 = arith.constant 3 : index
    %c0_37 = arith.constant 0 : index
    %87 = memref.load %arg3[%c3_36, %c0_37] : memref<4x4xf32, #tpu.memory_space<smem>>
    %88 = vector.extract_strided_slice %1 {offsets = [0, 0], sizes = [1, 256], strides = [1, 1]} : vector<4x256xf32> to vector<1x256xf32>
    %89 = vector.broadcast %87 : f32 to vector<1x256xf32>
    %90 = arith.mulf %89, %88 : vector<1x256xf32>
    %91 = arith.addf %86, %90 : vector<1x256xf32>
    %c3_38 = arith.constant 3 : index
    %c1_39 = arith.constant 1 : index
    %92 = memref.load %arg3[%c3_38, %c1_39] : memref<4x4xf32, #tpu.memory_space<smem>>
    %93 = vector.extract_strided_slice %1 {offsets = [1, 0], sizes = [1, 256], strides = [1, 1]} : vector<4x256xf32> to vector<1x256xf32>
    %94 = vector.broadcast %92 : f32 to vector<1x256xf32>
    %95 = arith.mulf %94, %93 : vector<1x256xf32>
    %96 = arith.addf %91, %95 : vector<1x256xf32>
    %c3_40 = arith.constant 3 : index
    %c2_41 = arith.constant 2 : index
    %97 = memref.load %arg3[%c3_40, %c2_41] : memref<4x4xf32, #tpu.memory_space<smem>>
    %98 = vector.extract_strided_slice %1 {offsets = [2, 0], sizes = [1, 256], strides = [1, 1]} : vector<4x256xf32> to vector<1x256xf32>
    %99 = vector.broadcast %97 : f32 to vector<1x256xf32>
    %100 = arith.mulf %99, %98 : vector<1x256xf32>
    %101 = arith.addf %96, %100 : vector<1x256xf32>
    %c3_42 = arith.constant 3 : index
    %c3_43 = arith.constant 3 : index
    %102 = memref.load %arg3[%c3_42, %c3_43] : memref<4x4xf32, #tpu.memory_space<smem>>
    %103 = vector.extract_strided_slice %1 {offsets = [3, 0], sizes = [1, 256], strides = [1, 1]} : vector<4x256xf32> to vector<1x256xf32>
    %104 = vector.broadcast %102 : f32 to vector<1x256xf32>
    %105 = arith.mulf %104, %103 : vector<1x256xf32>
    %106 = arith.addf %101, %105 : vector<1x256xf32>
    %c0_44 = arith.constant 0 : index
    %c3_45 = arith.constant 3 : index
    %c0_46 = arith.constant 0 : index
    %107 = vector.load %arg5[%c0_44, %c3_45, %c0_46] : memref<1x4x256xf32, #tpu.memory_space<vmem>>, vector<1x1x256xf32>
    %108 = vector.shape_cast %107 : vector<1x1x256xf32> to vector<1x256xf32>
    %109 = vector.shape_cast %106 : vector<1x256xf32> to vector<1x1x256xf32>
    tpu.vector_store %arg5[%c0_44, %c3_45, %c0_46], %109 {strides = array<i32>} : memref<1x4x256xf32, #tpu.memory_space<vmem>>, vector<1x1x256xf32>,
    return
  }
  func.func @transform_0(%arg0: i32, %arg1: i32) -> (i32, i32, i32) {
    %c0_i32 = arith.constant 0 : i32
    %c0_i32_0 = arith.constant 0 : i32
    return %arg0, %c0_i32, %arg1 : i32, i32, i32
  }
  func.func @transform_1(%arg0: i32, %arg1: i32) -> (i32, i32) {
    %c0_i32 = arith.constant 0 : i32
    %c0_i32_0 = arith.constant 0 : i32
    %c0_i32_1 = arith.constant 0 : i32
    return %c0_i32, %c0_i32_0 : i32, i32
  }
  func.func @transform_2(%arg0: i32, %arg1: i32) -> i32 {
    %c0_i32 = arith.constant 0 : i32
    %c0_i32_0 = arith.constant 0 : i32
    return %c0_i32 : i32
  }
  func.func @transform_3(%arg0: i32, %arg1: i32) -> (i32, i32, i32) {
    %c0_i32 = arith.constant 0 : i32
    %c0_i32_0 = arith.constant 0 : i32
    return %arg0, %c0_i32, %arg1 : i32, i32, i32
  }
}

</mosaic_0001>

<llo_original>
// kernel: residual_forward.1
$region0: #{residual_forward.1}
  #allocation0 [shape = 'u32[]', space=smem, size = 0x4, offset = 0x4, fixed_abs, tag = 'smem constant byte address 0x4 - core index']
  #allocation1 [shape = 'u32[144,128]{1,0:T(1,128)}', space=vmem, size = 0x12000, scoped, tag = 'internal scratch']
  %s0 = inlined_call_operand.vmem [shape: f32[2,4,256], index: 0, kind: input, shape index: {}]
  %s1 = inlined_call_operand.vmem [shape: f32[4,4], index: 1, kind: input, shape index: {}]
  %s2 = inlined_call_operand.vmem [shape: f32[4], index: 2, kind: input, shape index: {}]
  %s3 = inlined_call_operand.vmem [shape: f32[2,4,256], index: 3, kind: output, shape index: {}]
  %s4 = sld [smem:[#allocation0]]
  $region53: #{residual_forward.1} parent=0
    _
  %s6 = ssub.s32 1, %s4
  %s7 = scalar_select 0, %s6, %s4
  $region1: #{residual_forward.1} parent=0
    #allocation2 [shape = 'u8[2048]{0}', space=smem, size = 0x800, scoped, tag = 'input window, operand 1, single buffered']
    #allocation3 [shape = 's32[2]{0}', space=sflag, size = 0x8, scoped, tag = 'scoped memory for residual_forward.1']
    #allocation4 [shape = 'u8[512]{0}', space=smem, size = 0x200, scoped, tag = 'input window, operand 2, single buffered']
    #allocation5 [shape = 's32[1]{0}', space=sflag, size = 0x4, scoped, tag = 'scoped memory for residual_forward.1']
    %8 = vsyncpa [#allocation3], 0
    %9 = vsyncpa [#allocation5], 0
    loop: start=0, step=1, limit=4
    $region2: #{residual_forward.1} parent=1 // loop_pre_header
      _
    $region3: #{residual_forward.1} parent=1 // loop_header
      %s11 = sphi 0, %s15
      %p12 = scmp.ge.s32.totalorder %s11, 4
      %s18 = sphi 0, %s30
      %s19 = sphi 0, %s26
      %s20 = sphi 0, %s18
      %s21 = sphi 0, %s19
      %s22 = sphi 0, %s20
      %s23 = sphi 0, %s21
      %s35 = sphi 0, %s37
      %s38 = sphi 0, %s35
      %s39 = sphi 0, %s38
      %s55 = sphi 0, %s39
      %s59 = sphi 0, %s59
      %s61 = sphi 0, %s59
      %s62 = sphi 0, %s61
      %s76 = sphi 0, %s62
      %s80 = sphi 0, %s80
      %s82 = sphi 0, %s80
      %s83 = sphi 0, %s82
      %s97 = sphi 0, %s83
      %s105 = sphi 0, %s107
      %s108 = sphi 0, %s105
      %s109 = sphi 0, %s108
      %s125 = sphi 0, %s109
    $region4: #{residual_forward.1} parent=1 // loop_header_branch
      %14 = sbr.rel (%p12) target = $region8
    $region5: #{residual_forward.1} parent=1 // loop_body
      %s16 = ssub.s32 %s11, 1
      %s17 = ssub.s32 %s11, 2
      %s24 = sadd.s32 1, %s19
      %p25 = scmp.ge.s32.totalorder %s24, 1
      %s26 = scalar_select %p25, 0, %s24
      %s27 = sadd.s32 1, %s18
      %s28 = scalar_select %p25, %s27, %s18
      %p29 = scmp.ge.s32.totalorder %s28, 2
      %s30 = scalar_select %p29, 0, %s28
      %s31 = ssub.s32 %s18, %s30
      %s32 = ssub.s32 %s19, %s26
      %s33 = sor.u32 %s31, %s32
      %p34 = scmp.eq.s32.totalorder %s33, 0
      %s36 = sadd.s32 %s35, 1
      %s37 = scalar_select %p34, %s35, %s36
      %p40 = pneg %p34
      %p41 = scmp.eq.s32.totalorder %s11, 1
      %p42 = por %p40, %p41
      %p43 = scmp.ne.s32.totalorder %s35, %s38
      %p44 = scmp.eq.s32.totalorder %s11, 0
      %p45 = por %p43, %p44
      %p46 = scmp.ne.s32.totalorder %s35, %s38
      %p47 = scmp.eq.s32.totalorder %s16, 1
      %p48 = por %p46, %p47
      %p49 = scmp.ne.s32.totalorder %s38, %s39
      %p50 = scmp.eq.s32.totalorder %s16, 0
      %p51 = por %p49, %p50
      %p52 = scmp.ne.s32.totalorder %s38, %s39
      %p53 = scmp.eq.s32.totalorder %s17, 1
      %p54 = por %p52, %p53
      %p56 = scmp.ne.s32.totalorder %s39, %s55
      %p57 = scmp.eq.s32.totalorder %s17, 0
      %p58 = por %p56, %p57
      %s60 = sadd.s32 %s59, 1
      %p63 = scmp.eq.s32.totalorder %s11, 1
      %p64 = scmp.ne.s32.totalorder %s59, %s61
      %p65 = scmp.eq.s32.totalorder %s11, 0
      %p66 = por %p64, %p65
      %p67 = scmp.ne.s32.totalorder %s59, %s61
      %p68 = scmp.eq.s32.totalorder %s16, 1
      %p69 = por %p67, %p68
      %p70 = scmp.ne.s32.totalorder %s61, %s62
      %p71 = scmp.eq.s32.totalorder %s16, 0
      %p72 = por %p70, %p71
      %p73 = scmp.ne.s32.totalorder %s61, %s62
      %p74 = scmp.eq.s32.totalorder %s17, 1
      %p75 = por %p73, %p74
      %p77 = scmp.ne.s32.totalorder %s62, %s76
      %p78 = scmp.eq.s32.totalorder %s17, 0
      %p79 = por %p77, %p78
      %s81 = sadd.s32 %s80, 1
      %p84 = scmp.eq.s32.totalorder %s11, 1
      %p85 = scmp.ne.s32.totalorder %s80, %s82
      %p86 = scmp.eq.s32.totalorder %s11, 0
      %p87 = por %p85, %p86
      %p88 = scmp.ne.s32.totalorder %s80, %s82
      %p89 = scmp.eq.s32.totalorder %s16, 1
      %p90 = por %p88, %p89
      %p91 = scmp.ne.s32.totalorder %s82, %s83
      %p92 = scmp.eq.s32.totalorder %s16, 0
      %p93 = por %p91, %p92
      %p94 = scmp.ne.s32.totalorder %s82, %s83
      %p95 = scmp.eq.s32.totalorder %s17, 1
      %p96 = por %p94, %p95
      %p98 = scmp.ne.s32.totalorder %s83, %s97
      %p99 = scmp.eq.s32.totalorder %s17, 0
      %p100 = por %p98, %p99
      %s101 = ssub.s32 %s18, %s30
      %s102 = ssub.s32 %s19, %s26
      %s103 = sor.u32 %s101, %s102
      %p104 = scmp.eq.s32.totalorder %s103, 0
      %s106 = sadd.s32 %s105, 1
      %s107 = scalar_select %p104, %s105, %s106
      %p110 = pneg %p104
      %p111 = scmp.eq.s32.totalorder %s11, 1
      %p112 = por %p110, %p111
      %p113 = scmp.ne.s32.totalorder %s105, %s108
      %p114 = scmp.eq.s32.totalorder %s11, 0
      %p115 = por %p113, %p114
      %p116 = scmp.ne.s32.totalorder %s105, %s108
      %p117 = scmp.eq.s32.totalorder %s16, 1
      %p118 = por %p116, %p117
      %p119 = scmp.ne.s32.totalorder %s108, %s109
      %p120 = scmp.eq.s32.totalorder %s16, 0
      %p121 = por %p119, %p120
      %p122 = scmp.ne.s32.totalorder %s108, %s109
      %p123 = scmp.eq.s32.totalorder %s17, 1
      %p124 = por %p122, %p123
      %p126 = scmp.ne.s32.totalorder %s109, %s125
      %p127 = scmp.eq.s32.totalorder %s17, 0
      %p128 = por %p126, %p127
      %p129 = scmp.le.s32.totalorder 1, %s11
      %p130 = scmp.lt.s32.totalorder %s11, 3
      %p131 = pnand %p129, %p130
      %p132 = pneg %p131
      // Predicated region
      $region9: #{residual_forward.1} parent=5 // pred_check
        _
      $region10: #{residual_forward.1} parent=5 // pred_check_branch
        %134 = sbr.rel (%p131) target = $region12
      $region11: #{residual_forward.1} parent=5 // pred_region
        %s135 = ssub.s32 %s11, 1
        // Predicated region
        $region13: #{residual_forward.1} parent=11 // pred_check
          %p136 = pneg %p72
        $region14: #{residual_forward.1} parent=11 // pred_check_branch
          %138 = sbr.rel (%p136) target = $region16
        $region15: #{residual_forward.1} parent=11 // pred_region
          %s140 = ssub.s32 64, 64
          %141 = vsyncadd [#allocation3], %s140
          %s143 = sshll.u32 %s1, 4
          %s144 = int_to_ptr.vmem [resolvable:$true] %s143
          %146 = dma.vmem_to_smem %s144, 64, [#allocation2], [#allocation3]
        $region16: #{residual_forward.1} parent=11 // pred_fallthru
          _
        // Predicated region
        $region17: #{residual_forward.1} parent=11 // pred_check
          %p147 = pneg %p93
        $region18: #{residual_forward.1} parent=11 // pred_check_branch
          %149 = sbr.rel (%p147) target = $region20
        $region19: #{residual_forward.1} parent=11 // pred_region
          %s151 = ssub.s32 16, 16
          %152 = vsyncadd [#allocation5], %s151
          %s154 = sshll.u32 %s2, 4
          %s155 = int_to_ptr.vmem [resolvable:$true] %s154
          %157 = dma.vmem_to_smem %s155, 16, [#allocation4], [#allocation5]
        $region20: #{residual_forward.1} parent=11 // pred_fallthru
          _
      $region12: #{residual_forward.1} parent=5 // pred_fallthru
        _
      %p158 = scmp.lt.s32.totalorder %s11, 2
      // Predicated region
      $region21: #{residual_forward.1} parent=5 // pred_check
        %p159 = pneg %p158
      $region22: #{residual_forward.1} parent=5 // pred_check_branch
        %161 = sbr.rel (%p159) target = $region24
      $region23: #{residual_forward.1} parent=5 // pred_region
        // Predicated region
        $region25: #{residual_forward.1} parent=23 // pred_check
          %p162 = pneg %p45
        $region26: #{residual_forward.1} parent=23 // pred_check_branch
          %164 = sbr.rel (%p162) target = $region28
        $region27: #{residual_forward.1} parent=23 // pred_region
          %s165 = smul.u32 2, %s19
          %p166 = scmp.lt.s32.totalorder %s18, 1
          %s167 = scalar_select %p166, %s18, 1
          %p168 = scmp.lt.s32.totalorder %s165, 1
          %s169 = scalar_select %p168, %s165, 1
          %s170 = smul.addr %s167, 2
          %s171 = sadd.s32 %s169, %s170
          %s172 = smul.addr %s171, 4
          %s173 = scalar_lea.vmem %s0, %s172
          %s174 = smul.u32 2, %s19
        $region28: #{residual_forward.1} parent=23 // pred_fallthru
          _
      $region24: #{residual_forward.1} parent=5 // pred_fallthru
        _
      %p175 = scmp.le.s32.totalorder 1, %s11
      %p176 = scmp.lt.s32.totalorder %s11, 3
      %p177 = pnand %p175, %p176
      %p178 = pneg %p177
      // Predicated region
      $region29: #{residual_forward.1} parent=5 // pred_check
        _
      $region30: #{residual_forward.1} parent=5 // pred_check_branch
        %180 = sbr.rel (%p177) target = $region32
      $region31: #{residual_forward.1} parent=5 // pred_region
        %s181 = ssub.s32 %s11, 1
        // Predicated region
        $region33: #{residual_forward.1} parent=31 // pred_check
          %p182 = pneg %p72
        $region34: #{residual_forward.1} parent=31 // pred_check_branch
          %184 = sbr.rel (%p182) target = $region36
        $region35: #{residual_forward.1} parent=31 // pred_region
          %185 = dma.done [#allocation3], 64
        $region36: #{residual_forward.1} parent=31 // pred_fallthru
          _
        // Predicated region
        $region37: #{residual_forward.1} parent=31 // pred_check
          %p186 = pneg %p93
        $region38: #{residual_forward.1} parent=31 // pred_check_branch
          %188 = sbr.rel (%p186) target = $region40
        $region39: #{residual_forward.1} parent=31 // pred_region
          %189 = dma.done [#allocation5], 16
        $region40: #{residual_forward.1} parent=31 // pred_fallthru
          _
        %190 = sfence
        %s191 = smul.u32 2, %s21
        %p192 = scmp.lt.s32.totalorder %s20, 1
        %s193 = scalar_select %p192, %s20, 1
        %p194 = scmp.lt.s32.totalorder %s191, 1
        %s195 = scalar_select %p194, %s191, 1
        %s196 = smul.addr %s193, 2
        %s197 = sadd.s32 %s195, %s196
        %s198 = smul.addr %s197, 4
        %s199 = scalar_lea.vmem %s0, %s198
        %p200 = pneg %p51
        %p201 = pneg %p48
        %p202 = pneg %p72
        %p203 = pneg %p69
        %p204 = pneg %p93
        %p205 = pneg %p90
        %p206 = pneg %p121
        %p207 = pneg %p118
        %s208 = smul.u32 2, %s21
        %p209 = scmp.lt.s32.totalorder %s20, 1
        %s210 = scalar_select %p209, %s20, 1
        %p211 = scmp.lt.s32.totalorder %s208, 1
        %s212 = scalar_select %p211, %s208, 1
        %s213 = smul.addr %s210, 2
        %s214 = sadd.s32 %s212, %s213
        %s215 = smul.addr %s214, 4
        %s216 = scalar_lea.vmem %s3, %s215
        %s217 = smul.u32 2, %s21
        %p218 = scmp.lt.s32.totalorder %s20, 1
        %s219 = scalar_select %p218, %s20, 1
        %p220 = scmp.lt.s32.totalorder %s217, 1
        %s221 = scalar_select %p220, %s217, 1
        %s222 = smul.addr %s219, 2
        %s223 = sadd.s32 %s221, %s222
        %s224 = smul.addr %s223, 4
        %s225 = scalar_lea.vmem %s0, %s224
        %s226 = smul.u32 2, %s21
        %s227 = smul.u32 2, %s21
        %p228 = scmp.lt.s32.totalorder %s20, 1
        %s229 = scalar_select %p228, %s20, 1
        %p230 = scmp.lt.s32.totalorder %s227, 1
        %s231 = scalar_select %p230, %s227, 1
        %s232 = smul.addr %s229, 2
        %s233 = sadd.s32 %s231, %s232
        %s234 = smul.addr %s233, 4
        %s235 = scalar_lea.vmem %s3, %s234
        %s236 = smul.u32 2, %s21
        %v237 = vld [vmem:[%s225] sm:$0xff]
        %s238 = sld [smem:[#allocation4]]
        %v239 = vstv %s238
        %v240 = vadd.f32 %v237, %v239
        %s241 = sld [smem:[#allocation2]]
        %v242 = vstv %s241
        %v243 = vmul.f32 %v242, %v237
        %v244 = vadd.f32 %v240, %v243
        %s245 = sld [smem:[#allocation2 + $0x1]]
        %v246 = vstv %s245
        %v247 = vmul.f32 %v246, %v237
        %v249 = vrot.slane %v247, 5
        %v250 = vrot.slane %v249, 4
        %v252 = vadd.f32 %v244, %v250
        %s253 = sld [smem:[#allocation2 + $0x2]]
        %v254 = vstv %s253
        %v255 = vmul.f32 %v254, %v237
        %v257 = vrot.slane %v255, 6
        %v258 = vrot.slane %v257, 4
        %v260 = vadd.f32 %v252, %v258
        %s261 = sld [smem:[#allocation2 + $0x3]]
        %v262 = vstv %s261
        %v263 = vmul.f32 %v262, %v237
        %v265 = vrot.slane %v263, 7
        %v266 = vrot.slane %v265, 4
        %v268 = vadd.f32 %v260, %v266
        %v271 = vunpack.c.l.s4 1966171168
        %v272 = vunpack.c.0.s8 %v271
        %v273 = vlaneseq
        %v274 = vshrl.u32 %v273, 7
        %v275 = vsub.s32 %v272, %v274
        %v276 = vrot.slane %v268, %v275
        %v278 = vunpack.c.l.s4 1966171168
        %v279 = vunpack.c.0.s8 %v278
        %v280 = vlaneseq
        %v281 = vshrl.u32 %v280, 7
        %v282 = vsub.s32 %v279, %v281
        %v283 = vrot.slane %v276, %v282
        %v285 = vlaneseq
        %vm286 = vcmp.ge.s32.totalorder %v285, 0
        %vm287 = vcmp.lt.s32.totalorder %v285, 256
        %vm288 = vmand %vm286, %vm287
        %289 = vst.msk [vmem:[%s235] ss:$4 sm:$0x3] %vm288, %v283
        %s290 = sld [smem:[#allocation4 + $0x1]]
        %v291 = vstv %s290
        %v292 = vadd.f32 %v237, %v291
        %s293 = sld [smem:[#allocation2 + $0x80]]
        %v294 = vstv %s293
        %v295 = vmul.f32 %v294, %v237
        %v297 = vrot.slane %v295, 7
        %v299 = vadd.f32 %v292, %v297
        %s300 = sld [smem:[#allocation2 + $0x81]]
        %v301 = vstv %s300
        %v302 = vmul.f32 %v301, %v237
        %v303 = vadd.f32 %v299, %v302
        %s304 = sld [smem:[#allocation2 + $0x82]]
        %v305 = vstv %s304
        %v306 = vmul.f32 %v305, %v237
        %v308 = vrot.slane %v306, 5
        %v309 = vrot.slane %v308, 4
        %v311 = vadd.f32 %v303, %v309
        %s312 = sld [smem:[#allocation2 + $0x83]]
        %v313 = vstv %s312
        %v314 = vmul.f32 %v313, %v237
        %v316 = vrot.slane %v314, 6
        %v317 = vrot.slane %v316, 4
        %v319 = vadd.f32 %v311, %v317
        %v322 = vunpack.c.l.s4 1966171168
        %v323 = vunpack.c.0.s8 %v322
        %v324 = vlaneseq
        %v325 = vshrl.u32 %v324, 7
        %v326 = vsub.s32 %v323, %v325
        %v327 = vrot.slane %v319, %v326
        %v328 = vcombine.high %v327, %v327
        %v330 = vunpack.c.l.s4 1966171168
        %v331 = vunpack.c.0.s8 %v330
        %v332 = vlaneseq
        %v333 = vshrl.u32 %v332, 7
        %v334 = vsub.s32 %v331, %v333
        %v335 = vrot.slane %v328, %v334
        %s337 = scalar_lea.vmem %s235, 1
        %338 = vst.msk [vmem:[%s337] ss:$4 sm:$0x3] %vm288, %v335
        %s339 = sld [smem:[#allocation4 + $0x2]]
        %v340 = vstv %s339
        %v341 = vadd.f32 %v237, %v340
        %s342 = sld [smem:[#allocation2 + $0x100]]
        %v343 = vstv %s342
        %v344 = vmul.f32 %v343, %v237
        %v346 = vrot.slane %v344, 6
        %v348 = vadd.f32 %v341, %v346
        %s349 = sld [smem:[#allocation2 + $0x101]]
        %v350 = vstv %s349
        %v351 = vmul.f32 %v350, %v237
        %v353 = vrot.slane %v351, 7
        %v355 = vadd.f32 %v348, %v353
        %s356 = sld [smem:[#allocation2 + $0x102]]
        %v357 = vstv %s356
        %v358 = vmul.f32 %v357, %v237
        %v359 = vadd.f32 %v355, %v358
        %s360 = sld [smem:[#allocation2 + $0x103]]
        %v361 = vstv %s360
        %v362 = vmul.f32 %v361, %v237
        %v364 = vrot.slane %v362, 5
        %v365 = vrot.slane %v364, 4
        %v367 = vadd.f32 %v359, %v365
        %v370 = vunpack.c.l.s4 1966171168
        %v371 = vunpack.c.0.s8 %v370
        %v372 = vlaneseq
        %v373 = vshrl.u32 %v372, 7
        %v374 = vsub.s32 %v371, %v373
        %v375 = vrot.slane %v367, %v374
        %v377 = vunpack.c.l.s4 1966171168
        %v378 = vunpack.c.0.s8 %v377
        %v379 = vlaneseq
        %v380 = vshrl.u32 %v379, 7
        %v381 = vsub.s32 %v378, %v380
        %v382 = vrot.slane %v375, %v381
        %v383 = vcombine.high %v382, %v382
        %s385 = scalar_lea.vmem %s235, 2
        %386 = vst.msk [vmem:[%s385] ss:$4 sm:$0x3] %vm288, %v383
        %s387 = sld [smem:[#allocation4 + $0x3]]
        %v388 = vstv %s387
        %v389 = vadd.f32 %v237, %v388
        %s390 = sld [smem:[#allocation2 + $0x180]]
        %v391 = vstv %s390
        %v392 = vmul.f32 %v391, %v237
        %v394 = vrot.slane %v392, 5
        %v396 = vadd.f32 %v389, %v394
        %s397 = sld [smem:[#allocation2 + $0x181]]
        %v398 = vstv %s397
        %v399 = vmul.f32 %v398, %v237
        %v401 = vrot.slane %v399, 6
        %v403 = vadd.f32 %v396, %v401
        %s404 = sld [smem:[#allocation2 + $0x182]]
        %v405 = vstv %s404
        %v406 = vmul.f32 %v405, %v237
        %v408 = vrot.slane %v406, 7
        %v410 = vadd.f32 %v403, %v408
        %s411 = sld [smem:[#allocation2 + $0x183]]
        %v412 = vstv %s411
        %v413 = vmul.f32 %v412, %v237
        %v414 = vadd.f32 %v410, %v413
        %v417 = vunpack.c.l.s4 1966171168
        %v418 = vunpack.c.0.s8 %v417
        %v419 = vlaneseq
        %v420 = vshrl.u32 %v419, 7
        %v421 = vsub.s32 %v418, %v420
        %v422 = vrot.slane %v414, %v421
        %v423 = vcombine.high %v422, %v422
        %v425 = vunpack.c.l.s4 1966171168
        %v426 = vunpack.c.0.s8 %v425
        %v427 = vlaneseq
        %v428 = vshrl.u32 %v427, 7
        %v429 = vsub.s32 %v426, %v428
        %v430 = vrot.slane %v423, %v429
        %v431 = vcombine.high %v430, %v430
        %s433 = scalar_lea.vmem %s235, 3
        %434 = vst.msk [vmem:[%s433] ss:$4 sm:$0x3] %vm288, %v431
        %s435 = smul.u32 2, %s21
        %p436 = scmp.lt.s32.totalorder %s20, 1
        %s437 = scalar_select %p436, %s20, 1
        %p438 = scmp.lt.s32.totalorder %s435, 1
        %s439 = scalar_select %p438, %s435, 1
        %s440 = smul.addr %s437, 2
        %s441 = sadd.s32 %s439, %s440
        %s442 = smul.addr %s441, 4
        %s443 = scalar_lea.vmem %s3, %s442
        // Predicated region
        $region41: #{residual_forward.1} parent=31 // pred_check
          %p444 = pneg %p118
        $region42: #{residual_forward.1} parent=31 // pred_check_branch
          %446 = sbr.rel (%p444) target = $region44
        $region43: #{residual_forward.1} parent=31 // pred_region
          %s447 = smul.u32 2, %s21
        $region44: #{residual_forward.1} parent=31 // pred_fallthru
          _
      $region32: #{residual_forward.1} parent=5 // pred_fallthru
        _
      %p448 = scmp.le.s32.totalorder 2, %s11
      // Predicated region
      $region45: #{residual_forward.1} parent=5 // pred_check
        %p449 = pneg %p448
      $region46: #{residual_forward.1} parent=5 // pred_check_branch
        %451 = sbr.rel (%p449) target = $region48
      $region47: #{residual_forward.1} parent=5 // pred_region
        %s452 = ssub.s32 %s11, 2
        // Predicated region
        $region49: #{residual_forward.1} parent=47 // pred_check
          %p453 = pneg %p124
        $region50: #{residual_forward.1} parent=47 // pred_check_branch
          %455 = sbr.rel (%p453) target = $region52
        $region51: #{residual_forward.1} parent=47 // pred_region
          %s456 = smul.u32 2, %s23
          %p457 = scmp.lt.s32.totalorder %s22, 1
          %s458 = scalar_select %p457, %s22, 1
          %p459 = scmp.lt.s32.totalorder %s456, 1
          %s460 = scalar_select %p459, %s456, 1
          %s461 = smul.addr %s458, 2
          %s462 = sadd.s32 %s460, %s461
          %s463 = smul.addr %s462, 4
          %s464 = scalar_lea.vmem %s3, %s463
        $region52: #{residual_forward.1} parent=47 // pred_fallthru
          _
      $region48: #{residual_forward.1} parent=5 // pred_fallthru
        _
    $region6: #{residual_forward.1} parent=1 // loop_footer
      %s15 = sadd.s32 1, %s11
    $region7: #{residual_forward.1} parent=1 // loop_footer_branch
      %10 = sbr.rel target = $region3
    $region8: #{residual_forward.1} parent=1 // loop_exit
      _
    %465 = vsyncpa [#allocation3], 1
    %s466 = scalar_lea.sflag [#allocation3], 1
    %467 = vsyncpa %s466, 1
    %468 = vsyncpa [#allocation5], 1

</llo_original>
